<compile_context>
chip_gen: v7x
topology: tpu7x:2x2x1
jax: 0.10.0
libtpu: 0.0.40
codegen_flags: <defaults>
</compile_context>

<pallas_src>
import jax
import jax.numpy as jnp
from jax import lax
from jax.experimental import pallas as pl
from jax.experimental.pallas import tpu as pltpu


_VMEM_LIMIT_BYTES = 32 * 1024 * 1024   # safe on v5e/v6e/v7x, far above demo needs


# ---------------------------------------------------------------------------
# Shared per-step math (operates on arrays, used by both kernels)
# ---------------------------------------------------------------------------
def _decoder_step_math(emb, hid, enc,
                       emb_cat_w, emb_cat_b,
                       hid_cat_w, hid_cat_b,
                       comb_wa, w_ih, b_ih, out_w, out_b):
    """One AttnDecoderRNN step in f32.

    emb: (B, H)   embedded input token (dropout = eval-mode identity)
    hid: (B, H)   hidden[0]
    enc: (B, Lp, H) encoder outputs, batch-major, zero-padded to Lp (mult. of 128)
    Packed weights: emb_cat_w = [attn_w[:H] pad | comb_w[:H]]   (H, Lp+H)
                    hid_cat_w = [attn_w[H:] pad | w_hh]         (H, Lp+3H)
    Padded attention columns carry bias -1e30 so they vanish in the softmax.
    """
    B, H = emb.shape
    Lp = enc.shape[1]

    # One MXU push per activation; hid_proj is off the attention dependency chain.
    emb_proj = jnp.dot(emb, emb_cat_w, preferred_element_type=jnp.float32) + emb_cat_b
    hid_proj = jnp.dot(hid, hid_cat_w, preferred_element_type=jnp.float32) + hid_cat_b

    # Lane-aligned splits (Lp is a multiple of 128).
    scores = emb_proj[:, :Lp] + hid_proj[:, :Lp]    # attn(cat(emb, hid))   (B, Lp)
    comb_e = emb_proj[:, Lp:]                       # emb @ comb_w[:H] + comb_b
    gh = hid_proj[:, Lp:]                           # hid @ w_hh + b_hh     (B, 3H)

    # softmax over the (padded) max_length axis; padded lanes -> exp(-1e30-m) == 0
    m = jnp.max(scores, axis=1, keepdims=True)
    e = jnp.exp(scores - m)
    attn_w = e / jnp.sum(e, axis=1, keepdims=True)  # (B, Lp)

    # bmm(attn_w.unsqueeze(1), encoder_outputs): batched MXU matmul (padded rows of
    # enc are zero, padded attn lanes are zero, so padding contributes nothing).
    attn_applied = lax.dot_general(
        attn_w[:, None, :], enc,
        dimension_numbers=(((2,), (1,)), ((0,), (0,))),
        preferred_element_type=jnp.float32)[:, 0, :]            # (B, H)

    # attn_combine(cat(emb, attn_applied)) + ReLU
    x = jnp.maximum(
        comb_e + jnp.dot(attn_applied, comb_wa, preferred_element_type=jnp.float32),
        0.0)

    # GRU cell (single layer, seq_len = 1), PyTorch gate order [r | z | n]
    gi = jnp.dot(x, w_ih, preferred_element_type=jnp.float32) + b_ih
    r = jax.nn.sigmoid(gi[:, 0:H] + gh[:, 0:H])
    z = jax.nn.sigmoid(gi[:, H:2 * H] + gh[:, H:2 * H])
    n = jnp.tanh(gi[:, 2 * H:3 * H] + r * gh[:, 2 * H:3 * H])
    h_new = (1.0 - z) * n + z * hid                 # (B, H)

    # out linear + log_softmax(dim=1)
    logits = jnp.dot(h_new, out_w, preferred_element_type=jnp.float32) + out_b
    lmax = jnp.max(logits, axis=1, keepdims=True)
    lse = jnp.log(jnp.sum(jnp.exp(logits - lmax), axis=1, keepdims=True)) + lmax
    logp = logits - lse
    return logp, h_new, attn_w


# ---------------------------------------------------------------------------
# Kernel 1: single decode step (matches the module's forward exactly)
# ---------------------------------------------------------------------------
def decoder_step_kernel(emb_ref, hid_ref, enc_ref,
                        emb_cat_w_ref, emb_cat_b_ref,
                        hid_cat_w_ref, hid_cat_b_ref,
                        comb_wa_ref, w_ih_ref, b_ih_ref,
                        out_w_ref, out_b_ref,
                        logp_ref, newh_ref, attw_ref):
    logp, h_new, attn_w = _decoder_step_math(
        emb_ref[...], hid_ref[...], enc_ref[...],
        emb_cat_w_ref[...], emb_cat_b_ref[...],
        hid_cat_w_ref[...], hid_cat_b_ref[...],
        comb_wa_ref[...], w_ih_ref[...], b_ih_ref[...],
        out_w_ref[...], out_b_ref[...])
    logp_ref[...] = logp
    newh_ref[...] = h_new
    attw_ref[...] = attn_w          # lane-dense (B, Lp); wrapper slices to (B, L)


# ---------------------------------------------------------------------------
# Kernel 2: fused T-step teacher-forced decode loop (single invocation)
# ---------------------------------------------------------------------------
def decoder_fused_kernel(ids_ref,                    # VMEM (T, B, 1) int32
                         emb_tbl_ref, hid0_ref, enc_ref,
                         emb_cat_w_ref, emb_cat_b_ref,
                         hid_cat_w_ref, hid_cat_b_ref,
                         comb_wa_ref, w_ih_ref, b_ih_ref,
                         out_w_ref, out_b_ref,
                         logp_ref,                   # (T, B, O)   VMEM-resident
                         attw_ref,                   # (T, B, Lp)  VMEM-resident
                         newh_ref):                  # (B, H)
    T = ids_ref.shape[0]
    O = emb_tbl_ref.shape[0]
    B = hid0_ref.shape[0]

    def step(t, h):
        # Embedding gather as a single one-hot MXU matmul (no serialized
        # per-batch dynamic slices).  Out-of-range ids produce a zero row.
        # For large vocab, keep the table in HBM and DMA-gather rows instead.
        ids_t = ids_ref[t]                                           # (B, 1) int32
        one_hot = (ids_t == lax.broadcasted_iota(jnp.int32, (B, O), 1)
                   ).astype(jnp.float32)                             # (B, O)
        emb = jnp.dot(one_hot, emb_tbl_ref[...],
                      preferred_element_type=jnp.float32)            # (B, H)
        # TODO(synk): dropout(p=0.1) treated as eval-mode identity.

        logp, h_new, attn_w = _decoder_step_math(
            emb, h, enc_ref[...],
            emb_cat_w_ref[...], emb_cat_b_ref[...],
            hid_cat_w_ref[...], hid_cat_b_ref[...],
            comb_wa_ref[...], w_ih_ref[...], b_ih_ref[...],
            out_w_ref[...], out_b_ref[...])

        # Per-step results go to VMEM-resident output blocks; HBM writeback once.
        logp_ref[pl.ds(t, 1)] = logp[None]
        attw_ref[pl.ds(t, 1)] = attn_w[None]
        return h_new                                  # hidden carried in the loop

    newh_ref[...] = lax.fori_loop(0, T, step, hid0_ref[...], unroll=bool(T <= 8))


# ---------------------------------------------------------------------------
# Parameters
# ---------------------------------------------------------------------------
def make_params(key, hidden_size, output_size, max_length):
    H, O, L = hidden_size, output_size, max_length
    ks = jax.random.split(key, 12)

    def u(k, shape, fan_in):
        bound = 1.0 / jnp.sqrt(float(fan_in))
        return jax.random.uniform(k, shape, jnp.float32, -bound, bound)

    return dict(
        embedding=jax.random.normal(ks[0], (O, H), jnp.float32) * 0.1,
        # Linear weights are stored already transposed: (in_features, out_features)
        attn_w=u(ks[1], (2 * H, L), 2 * H),
        attn_b=u(ks[2], (1, L), 2 * H),
        comb_w=u(ks[3], (2 * H, H), 2 * H),
        comb_b=u(ks[4], (1, H), 2 * H),
        # GRU weights transposed to (H, 3H), gate order [r | z | n]
        w_ih=u(ks[5], (H, 3 * H), H),
        w_hh=u(ks[6], (H, 3 * H), H),
        b_ih=u(ks[7], (1, 3 * H), H),
        b_hh=u(ks[8], (1, 3 * H), H),
        out_w=u(ks[9], (H, O), H),
        out_b=u(ks[10], (1, O), H),
    )


def pack_params(params, lane=128):
    """Pre-concatenate weights with lane-aligned split points.

    Attention columns are zero-padded from L to Lp (multiple of `lane`); padded
    bias columns are -1e30 so the padded scores softmax to exactly zero.
    """
    H = params["comb_w"].shape[1]
    L = params["attn_w"].shape[1]
    Lp = ((L + lane - 1) // lane) * lane
    pad = Lp - L

    attn_w_emb = jnp.pad(params["attn_w"][:H], ((0, 0), (0, pad)))
    attn_w_hid = jnp.pad(params["attn_w"][H:], ((0, 0), (0, pad)))
    attn_b_pad = jnp.pad(params["attn_b"], ((0, 0), (0, pad)),
                         constant_values=-1e30)

    return dict(
        embedding=params["embedding"],
        emb_cat_w=jnp.concatenate([attn_w_emb, params["comb_w"][:H]], axis=1),
        emb_cat_b=jnp.concatenate([attn_b_pad, params["comb_b"]], axis=1),
        hid_cat_w=jnp.concatenate([attn_w_hid, params["w_hh"]], axis=1),
        hid_cat_b=jnp.concatenate(
            [jnp.zeros((1, Lp), jnp.float32), params["b_hh"]], axis=1),
        comb_wa=params["comb_w"][H:],
        w_ih=params["w_ih"], b_ih=params["b_ih"],
        out_w=params["out_w"], out_b=params["out_b"],
    )


# ---------------------------------------------------------------------------
# Wrappers
# ---------------------------------------------------------------------------
def _vmem_spec():
    return pl.BlockSpec(memory_space=pltpu.MemorySpace.VMEM)


def decoder_forward(packed, input_ids, hidden, encoder_outputs):
    """Single step. input_ids: (B,) int32; hidden: (1,B,H); encoder_outputs: (L,B,H)."""
    B = input_ids.shape[0]
    H = hidden.shape[-1]
    L = encoder_outputs.shape[0]
    O = packed["embedding"].shape[0]
    Lp = packed["emb_cat_w"].shape[1] - H            # padded attention width

    # glue: embedding gather + eval-mode dropout + batch-major, L-padded encoder outs
    embedded = packed["embedding"][input_ids]                    # (B, H)
    hid0 = hidden[0]                                             # (B, H)
    enc = jnp.transpose(encoder_outputs, (1, 0, 2))              # (B, L, H)
    enc = jnp.pad(enc, ((0, 0), (0, Lp - L), (0, 0)))            # (B, Lp, H)

    vmem = _vmem_spec()
    logp, new_h, attn_w = pl.pallas_call(
        decoder_step_kernel,
        out_shape=(
            jax.ShapeDtypeStruct((B, O), jnp.float32),
            jax.ShapeDtypeStruct((B, H), jnp.float32),
            jax.ShapeDtypeStruct((B, Lp), jnp.float32),
        ),
        in_specs=[vmem] * 12,
        out_specs=(vmem, vmem, vmem),
        compiler_params=pltpu.CompilerParams(vmem_limit_bytes=_VMEM_LIMIT_BYTES),
    )(embedded, hid0, enc,
      packed["emb_cat_w"], packed["emb_cat_b"],
      packed["hid_cat_w"], packed["hid_cat_b"],
      packed["comb_wa"], packed["w_ih"], packed["b_ih"],
      packed["out_w"], packed["out_b"])

    return logp, new_h[None, :, :], attn_w[:, :L]


def decoder_decode_fused(packed, token_ids, hidden, encoder_outputs):
    """T fused decode steps (teacher forcing). token_ids: (T, B) int32."""
    T, B = token_ids.shape
    H = hidden.shape[-1]
    L = encoder_outputs.shape[0]
    O = packed["embedding"].shape[0]
    Lp = packed["emb_cat_w"].shape[1] - H

    hid0 = hidden[0]
    enc = jnp.transpose(encoder_outputs, (1, 0, 2))              # (B, L, H)
    enc = jnp.pad(enc, ((0, 0), (0, Lp - L), (0, 0)))            # (B, Lp, H)
    ids = token_ids.astype(jnp.int32)[:, :, None]                # (T, B, 1)

    vmem = _vmem_spec()
    logp_all, attw_all, new_h = pl.pallas_call(
        decoder_fused_kernel,
        out_shape=(
            jax.ShapeDtypeStruct((T, B, O), jnp.float32),
            jax.ShapeDtypeStruct((T, B, Lp), jnp.float32),
            jax.ShapeDtypeStruct((B, H), jnp.float32),
        ),
        in_specs=[vmem] * 13,
        out_specs=(vmem, vmem, vmem),
        compiler_params=pltpu.CompilerParams(vmem_limit_bytes=_VMEM_LIMIT_BYTES),
    )(ids, packed["embedding"], hid0, enc,
      packed["emb_cat_w"], packed["emb_cat_b"],
      packed["hid_cat_w"], packed["hid_cat_b"],
      packed["comb_wa"], packed["w_ih"], packed["b_ih"],
      packed["out_w"], packed["out_b"])

    return logp_all, new_h[None, :, :], attw_all[:, :, :L]


# ---------------------------------------------------------------------------
# Pure-JAX reference mirroring the PyTorch forward (uses the raw params)
# ---------------------------------------------------------------------------
def decoder_forward_ref(params, input_ids, hidden, encoder_outputs):
    H = hidden.shape[-1]
    embedded = params["embedding"][input_ids]
    hid0 = hidden[0]
    cat1 = jnp.concatenate([embedded, hid0], axis=1)
    attn_w = jax.nn.softmax(cat1 @ params["attn_w"] + params["attn_b"], axis=1)
    enc = jnp.transpose(encoder_outputs, (1, 0, 2))
    attn_applied = jnp.einsum("bl,blh->bh", attn_w, enc)
    cat2 = jnp.concatenate([embedded, attn_applied], axis=1)
    x = jax.nn.relu(cat2 @ params["comb_w"] + params["comb_b"])
    gi = x @ params["w_ih"] + params["b_ih"]
    gh = hid0 @ params["w_hh"] + params["b_hh"]
    i_r, i_z, i_n = gi[:, :H], gi[:, H:2 * H], gi[:, 2 * H:]
    h_r, h_z, h_n = gh[:, :H], gh[:, H:2 * H], gh[:, 2 * H:]
    r = jax.nn.sigmoid(i_r + h_r)
    z = jax.nn.sigmoid(i_z + h_z)
    n = jnp.tanh(i_n + r * h_n)
    h_new = (1.0 - z) * n + z * hid0
    logits = h_new @ params["out_w"] + params["out_b"]
    logp = jax.nn.log_softmax(logits, axis=1)
    return logp, h_new[None], attn_w


if __name__ == "__main__":
    # small shapes consistent with the module
    B, H, O, L, T = 2, 32, 16, 8, 6   # batch, hidden, output (vocab), max_length, steps

    key = jax.random.PRNGKey(0)
    kp, ki, kh, ke, kt = jax.random.split(key, 5)

    params = make_params(kp, H, O, L)
    packed = pack_params(params)
    input_ids = jax.random.randint(ki, (B,), 0, O, dtype=jnp.int32)
    hidden = jax.random.normal(kh, (1, B, H), jnp.float32)
    encoder_outputs = jax.random.normal(ke, (L, B, H), jnp.float32)
    token_ids = jax.random.randint(kt, (T, B), 0, O, dtype=jnp.int32)

    # --- single decode step (module-exact) ---
    logp, new_hidden, attn_w = jax.jit(decoder_forward)(
        packed, input_ids, hidden, encoder_outputs)
    jax.block_until_ready((logp, new_hidden, attn_w))

    logp_r, new_hidden_r, attn_w_r = decoder_forward_ref(
        params, input_ids, hidden, encoder_outputs)
    assert jnp.allclose(logp, logp_r, atol=1e-4, rtol=1e-4)
    assert jnp.allclose(new_hidden, new_hidden_r, atol=1e-4, rtol=1e-4)
    assert jnp.allclose(attn_w, attn_w_r, atol=1e-4, rtol=1e-4)

    # --- fused T-step decode loop (one pallas_call, resident weights) ---
    logp_all, hid_T, attw_all = jax.jit(decoder_decode_fused)(
        packed, token_ids, hidden, encoder_outputs)
    jax.block_until_ready((logp_all, hid_T, attw_all))

    h_ref = hidden
    for t in range(T):
        lp_r, h_ref, aw_r = decoder_forward_ref(params, token_ids[t], h_ref,
                                                encoder_outputs)
        assert jnp.allclose(logp_all[t], lp_r, atol=1e-3, rtol=1e-3)
        assert jnp.allclose(attw_all[t], aw_r, atol=1e-3, rtol=1e-3)
    assert jnp.allclose(hid_T, h_ref, atol=1e-3, rtol=1e-3)

    print("KERNEL_OK")
</pallas_src>

<mosaic_0001>
module attributes {stable_mosaic.version = 11 : i64} {
  func.func @decoder_step_kernel(%arg0: memref<2x32xf32, #tpu.memory_space<vmem>>, %arg1: memref<2x32xf32, #tpu.memory_space<vmem>>, %arg2: memref<2x128x32xf32, #tpu.memory_space<vmem>>, %arg3: memref<32x160xf32, #tpu.memory_space<vmem>>, %arg4: memref<1x160xf32, #tpu.memory_space<vmem>>, %arg5: memref<32x224xf32, #tpu.memory_space<vmem>>, %arg6: memref<1x224xf32, #tpu.memory_space<vmem>>, %arg7: memref<32x32xf32, #tpu.memory_space<vmem>>, %arg8: memref<32x96xf32, #tpu.memory_space<vmem>>, %arg9: memref<1x96xf32, #tpu.memory_space<vmem>>, %arg10: memref<32x16xf32, #tpu.memory_space<vmem>>, %arg11: memref<1x16xf32, #tpu.memory_space<vmem>>, %arg12: memref<2x16xf32, #tpu.memory_space<vmem>>, %arg13: memref<2x32xf32, #tpu.memory_space<vmem>>, %arg14: memref<2x128xf32, #tpu.memory_space<vmem>>) attributes {dimension_semantics = [], scalar_prefetch = 0 : i64, scratch_operands = 0 : i64, tpu.core_type = #tpu.core_type<tc>} {
    %c0 = arith.constant 0 : index
    %c0_0 = arith.constant 0 : index
    %0 = vector.load %arg0[%c0, %c0_0] : memref<2x32xf32, #tpu.memory_space<vmem>>, vector<2x32xf32>
    %c0_1 = arith.constant 0 : index
    %c0_2 = arith.constant 0 : index
    %1 = vector.load %arg1[%c0_1, %c0_2] : memref<2x32xf32, #tpu.memory_space<vmem>>, vector<2x32xf32>
    %c0_3 = arith.constant 0 : index
    %c0_4 = arith.constant 0 : index
    %c0_5 = arith.constant 0 : index
    %2 = vector.load %arg2[%c0_3, %c0_4, %c0_5] : memref<2x128x32xf32, #tpu.memory_space<vmem>>, vector<2x128x32xf32>
    %c0_6 = arith.constant 0 : index
    %c0_7 = arith.constant 0 : index
    %3 = vector.load %arg3[%c0_6, %c0_7] : memref<32x160xf32, #tpu.memory_space<vmem>>, vector<32x160xf32>
    %c0_8 = arith.constant 0 : index
    %c0_9 = arith.constant 0 : index
    %4 = vector.load %arg4[%c0_8, %c0_9] : memref<1x160xf32, #tpu.memory_space<vmem>>, vector<1x160xf32>
    %c0_10 = arith.constant 0 : index
    %c0_11 = arith.constant 0 : index
    %5 = vector.load %arg5[%c0_10, %c0_11] : memref<32x224xf32, #tpu.memory_space<vmem>>, vector<32x224xf32>
    %c0_12 = arith.constant 0 : index
    %c0_13 = arith.constant 0 : index
    %6 = vector.load %arg6[%c0_12, %c0_13] : memref<1x224xf32, #tpu.memory_space<vmem>>, vector<1x224xf32>
    %c0_14 = arith.constant 0 : index
    %c0_15 = arith.constant 0 : index
    %7 = vector.load %arg7[%c0_14, %c0_15] : memref<32x32xf32, #tpu.memory_space<vmem>>, vector<32x32xf32>
    %c0_16 = arith.constant 0 : index
    %c0_17 = arith.constant 0 : index
    %8 = vector.load %arg8[%c0_16, %c0_17] : memref<32x96xf32, #tpu.memory_space<vmem>>, vector<32x96xf32>
    %c0_18 = arith.constant 0 : index
    %c0_19 = arith.constant 0 : index
    %9 = vector.load %arg9[%c0_18, %c0_19] : memref<1x96xf32, #tpu.memory_space<vmem>>, vector<1x96xf32>
    %c0_20 = arith.constant 0 : index
    %c0_21 = arith.constant 0 : index
    %10 = vector.load %arg10[%c0_20, %c0_21] : memref<32x16xf32, #tpu.memory_space<vmem>>, vector<32x16xf32>
    %c0_22 = arith.constant 0 : index
    %c0_23 = arith.constant 0 : index
    %11 = vector.load %arg11[%c0_22, %c0_23] : memref<1x16xf32, #tpu.memory_space<vmem>>, vector<1x16xf32>
    %cst = arith.constant dense<0.000000e+00> : vector<2x160xf32>
    %12 = tpu.matmul %0, %3, %cst {dimension_numbers = #tpu.dot_dimension_numbers<[1], [0], [0], [1], [0, 0, 1, 1], [], []>} : vector<2x32xf32>, vector<32x160xf32>, vector<2x160xf32> -> vector<2x160xf32>
    %13 = vector.broadcast %4 : vector<1x160xf32> to vector<2x160xf32>
    %14 = arith.addf %12, %13 : vector<2x160xf32>
    %cst_24 = arith.constant dense<0.000000e+00> : vector<2x224xf32>
    %15 = tpu.matmul %1, %5, %cst_24 {dimension_numbers = #tpu.dot_dimension_numbers<[1], [0], [0], [1], [0, 0, 1, 1], [], []>} : vector<2x32xf32>, vector<32x224xf32>, vector<2x224xf32> -> vector<2x224xf32>
    %16 = vector.broadcast %6 : vector<1x224xf32> to vector<2x224xf32>
    %17 = arith.addf %15, %16 : vector<2x224xf32>
    %18 = vector.extract_strided_slice %14 {offsets = [0, 0], sizes = [2, 128], strides = [1, 1]} : vector<2x160xf32> to vector<2x128xf32>
    %19 = vector.extract_strided_slice %17 {offsets = [0, 0], sizes = [2, 128], strides = [1, 1]} : vector<2x224xf32> to vector<2x128xf32>
    %20 = arith.addf %18, %19 : vector<2x128xf32>
    %21 = vector.extract_strided_slice %14 {offsets = [0, 128], sizes = [2, 32], strides = [1, 1]} : vector<2x160xf32> to vector<2x32xf32>
    %22 = vector.extract_strided_slice %17 {offsets = [0, 128], sizes = [2, 96], strides = [1, 1]} : vector<2x224xf32> to vector<2x96xf32>
    %cst_25 = arith.constant dense<0xFF800000> : vector<2xf32>
    %23 = vector.multi_reduction <maximumf>, %20, %cst_25 [1] : vector<2x128xf32> to vector<2xf32>
    %24 = vector.shape_cast %23 : vector<2xf32> to vector<2x1xf32>
    %25 = vector.broadcast %24 : vector<2x1xf32> to vector<2x128xf32>
    %26 = arith.subf %20, %25 : vector<2x128xf32>
    %27 = math.exp %26 : vector<2x128xf32>
    %cst_26 = arith.constant dense<0.000000e+00> : vector<2xf32>
    %28 = vector.multi_reduction <add>, %27, %cst_26 [1] : vector<2x128xf32> to vector<2xf32>
    %29 = vector.shape_cast %28 : vector<2xf32> to vector<2x1xf32>
    %30 = vector.broadcast %29 : vector<2x1xf32> to vector<2x128xf32>
    %31 = arith.divf %27, %30 : vector<2x128xf32>
    %32 = vector.shape_cast %31 : vector<2x128xf32> to vector<2x1x128xf32>
    %cst_27 = arith.constant dense<0.000000e+00> : vector<2x1x32xf32>
    %33 = tpu.matmul %32, %2, %cst_27 {dimension_numbers = #tpu.dot_dimension_numbers<[2], [1], [1], [2], [0, 0, 0, 1, 1, 2], [0], [0]>} : vector<2x1x128xf32>, vector<2x128x32xf32>, vector<2x1x32xf32> -> vector<2x1x32xf32>
    %34 = vector.shape_cast %33 : vector<2x1x32xf32> to vector<2x32xf32>
    %cst_28 = arith.constant dense<0.000000e+00> : vector<2x32xf32>
    %35 = tpu.matmul %34, %7, %cst_28 {dimension_numbers = #tpu.dot_dimension_numbers<[1], [0], [0], [1], [0, 0, 1, 1], [], []>} : vector<2x32xf32>, vector<32x32xf32>, vector<2x32xf32> -> vector<2x32xf32>
    %36 = arith.addf %21, %35 : vector<2x32xf32>
    %cst_29 = arith.constant 0.000000e+00 : f32
    %37 = vector.broadcast %cst_29 : f32 to vector<2x32xf32>
    %38 = arith.maximumf %36, %37 : vector<2x32xf32>
    %cst_30 = arith.constant dense<0.000000e+00> : vector<2x96xf32>
    %39 = tpu.matmul %38, %8, %cst_30 {dimension_numbers = #tpu.dot_dimension_numbers<[1], [0], [0], [1], [0, 0, 1, 1], [], []>} : vector<2x32xf32>, vector<32x96xf32>, vector<2x96xf32> -> vector<2x96xf32>
    %40 = vector.broadcast %9 : vector<1x96xf32> to vector<2x96xf32>
    %41 = arith.addf %39, %40 : vector<2x96xf32>
    %42 = vector.extract_strided_slice %41 {offsets = [0, 0], sizes = [2, 32], strides = [1, 1]} : vector<2x96xf32> to vector<2x32xf32>
    %43 = vector.extract_strided_slice %22 {offsets = [0, 0], sizes = [2, 32], strides = [1, 1]} : vector<2x96xf32> to vector<2x32xf32>
    %44 = arith.addf %42, %43 : vector<2x32xf32>
    %45 = arith.negf %44 : vector<2x32xf32>
    %46 = math.exp %45 : vector<2x32xf32>
    %cst_31 = arith.constant 1.000000e+00 : f32
    %47 = vector.broadcast %cst_31 : f32 to vector<2x32xf32>
    %48 = arith.addf %47, %46 : vector<2x32xf32>
    %49 = arith.divf %47, %48 : vector<2x32xf32>
    %50 = vector.extract_strided_slice %41 {offsets = [0, 32], sizes = [2, 32], strides = [1, 1]} : vector<2x96xf32> to vector<2x32xf32>
    %51 = vector.extract_strided_slice %22 {offsets = [0, 32], sizes = [2, 32], strides = [1, 1]} : vector<2x96xf32> to vector<2x32xf32>
    %52 = arith.addf %50, %51 : vector<2x32xf32>
    %53 = arith.negf %52 : vector<2x32xf32>
    %54 = math.exp %53 : vector<2x32xf32>
    %cst_32 = arith.constant 1.000000e+00 : f32
    %55 = vector.broadcast %cst_32 : f32 to vector<2x32xf32>
    %56 = arith.addf %55, %54 : vector<2x32xf32>
    %57 = arith.divf %55, %56 : vector<2x32xf32>
    %58 = vector.extract_strided_slice %41 {offsets = [0, 64], sizes = [2, 32], strides = [1, 1]} : vector<2x96xf32> to vector<2x32xf32>
    %59 = vector.extract_strided_slice %22 {offsets = [0, 64], sizes = [2, 32], strides = [1, 1]} : vector<2x96xf32> to vector<2x32xf32>
    %60 = arith.mulf %49, %59 : vector<2x32xf32>
    %61 = arith.addf %58, %60 : vector<2x32xf32>
    %62 = math.tanh %61 : vector<2x32xf32>
    %cst_33 = arith.constant 1.000000e+00 : f32
    %63 = vector.broadcast %cst_33 : f32 to vector<2x32xf32>
    %64 = arith.subf %63, %57 : vector<2x32xf32>
    %65 = arith.mulf %64, %62 : vector<2x32xf32>
    %66 = arith.mulf %57, %1 : vector<2x32xf32>
    %67 = arith.addf %65, %66 : vector<2x32xf32>
    %cst_34 = arith.constant dense<0.000000e+00> : vector<2x16xf32>
    %68 = tpu.matmul %67, %10, %cst_34 {dimension_numbers = #tpu.dot_dimension_numbers<[1], [0], [0], [1], [0, 0, 1, 1], [], []>} : vector<2x32xf32>, vector<32x16xf32>, vector<2x16xf32> -> vector<2x16xf32>
    %69 = vector.broadcast %11 : vector<1x16xf32> to vector<2x16xf32>
    %70 = arith.addf %68, %69 : vector<2x16xf32>
    %cst_35 = arith.constant dense<0xFF800000> : vector<2xf32>
    %71 = vector.multi_reduction <maximumf>, %70, %cst_35 [1] : vector<2x16xf32> to vector<2xf32>
    %72 = vector.shape_cast %71 : vector<2xf32> to vector<2x1xf32>
    %73 = vector.broadcast %72 : vector<2x1xf32> to vector<2x16xf32>
    %74 = arith.subf %70, %73 : vector<2x16xf32>
    %75 = math.exp %74 : vector<2x16xf32>
    %cst_36 = arith.constant dense<0.000000e+00> : vector<2xf32>
    %76 = vector.multi_reduction <add>, %75, %cst_36 [1] : vector<2x16xf32> to vector<2xf32>
    %77 = vector.shape_cast %76 : vector<2xf32> to vector<2x1xf32>
    %78 = math.log %77 : vector<2x1xf32>
    %79 = arith.addf %78, %72 : vector<2x1xf32>
    %80 = vector.broadcast %79 : vector<2x1xf32> to vector<2x16xf32>
    %81 = arith.subf %70, %80 : vector<2x16xf32>
    %c0_37 = arith.constant 0 : index
    %c0_38 = arith.constant 0 : index
    %82 = vector.load %arg12[%c0_37, %c0_38] : memref<2x16xf32, #tpu.memory_space<vmem>>, vector<2x16xf32>
    tpu.vector_store %arg12[%c0_37, %c0_38], %81 {strides = array<i32>} : memref<2x16xf32, #tpu.memory_space<vmem>>, vector<2x16xf32>,
    %c0_39 = arith.constant 0 : index
    %c0_40 = arith.constant 0 : index
    %83 = vector.load %arg13[%c0_39, %c0_40] : memref<2x32xf32, #tpu.memory_space<vmem>>, vector<2x32xf32>
    tpu.vector_store %arg13[%c0_39, %c0_40], %67 {strides = array<i32>} : memref<2x32xf32, #tpu.memory_space<vmem>>, vector<2x32xf32>,
    %c0_41 = arith.constant 0 : index
    %c0_42 = arith.constant 0 : index
    %84 = vector.load %arg14[%c0_41, %c0_42] : memref<2x128xf32, #tpu.memory_space<vmem>>, vector<2x128xf32>
    tpu.vector_store %arg14[%c0_41, %c0_42], %31 {strides = array<i32>} : memref<2x128xf32, #tpu.memory_space<vmem>>, vector<2x128xf32>,
    return
  }
}

</mosaic_0001>

<llo_original>
// kernel: decoder_forward.1
$region0: #{decoder_forward.1}
  #allocation0 [shape = 'u32[]', space=smem, size = 0x4, offset = 0x4, fixed_abs, tag = 'smem constant byte address 0x4 - core index']
  #allocation1 [shape = 'u32[144,128]{1,0:T(1,128)}', space=vmem, size = 0x12000, scoped, tag = 'internal scratch']
  %s0 = inlined_call_operand.vmem [shape: f32[2,32], index: 0, kind: input, shape index: {}]
  %s1 = inlined_call_operand.vmem [shape: f32[2,32], index: 1, kind: input, shape index: {}]
  %s2 = inlined_call_operand.vmem [shape: f32[2,128,32], index: 2, kind: input, shape index: {}]
  %s3 = inlined_call_operand.vmem [shape: f32[32,160], index: 3, kind: input, shape index: {}]
  %s4 = inlined_call_operand.vmem [shape: f32[1,160], index: 4, kind: input, shape index: {}]
  %s5 = inlined_call_operand.vmem [shape: f32[32,224], index: 5, kind: input, shape index: {}]
  %s6 = inlined_call_operand.vmem [shape: f32[1,224], index: 6, kind: input, shape index: {}]
  %s7 = inlined_call_operand.vmem [shape: f32[32,32], index: 7, kind: input, shape index: {}]
  %s8 = inlined_call_operand.vmem [shape: f32[32,96], index: 8, kind: input, shape index: {}]
  %s9 = inlined_call_operand.vmem [shape: f32[1,96], index: 9, kind: input, shape index: {}]
  %s10 = inlined_call_operand.vmem [shape: f32[32,16], index: 10, kind: input, shape index: {}]
  %s11 = inlined_call_operand.vmem [shape: f32[1,16], index: 11, kind: input, shape index: {}]
  %s12 = inlined_call_operand.hbm [shape: f32[2,16], index: 12, kind: output, shape index: {0}]
  %s13 = inlined_call_operand.hbm [shape: f32[2,32], index: 13, kind: output, shape index: {1}]
  %s14 = inlined_call_operand.hbm [shape: f32[2,128], index: 14, kind: output, shape index: {2}]
  %15 = xla_tuple %s12, %s13, %s14
  %s16 = sld [smem:[#allocation0]]
  $region74: #{decoder_forward.1} parent=0
    _
  %s18 = ssub.s32 1, %s16
  %s19 = scalar_select 0, %s18, %s16
  $region1: #{decoder_forward.1} parent=0
    #allocation2 [shape = 'u8[1024]{0}', space=vmem, size = 0x400, scoped, tag = 'output window, operand 0, single buffered']
    #allocation3 [shape = 's32[1]{0}', space=sflag, size = 0x4, scoped, tag = 'scoped memory for decoder_forward.1']
    #allocation4 [shape = 'u8[1024]{0}', space=vmem, size = 0x400, scoped, tag = 'output window, operand 1, single buffered']
    #allocation5 [shape = 's32[1]{0}', space=sflag, size = 0x4, scoped, tag = 'scoped memory for decoder_forward.1']
    #allocation6 [shape = 'u8[1024]{0}', space=vmem, size = 0x400, scoped, tag = 'output window, operand 2, single buffered']
    %20 = vsyncpa [#allocation3], 0
    %21 = vsyncpa [#allocation5], 0
    // Predicated region
    $region2: #{decoder_forward.1} parent=1 // pred_check
      _
    $region3: #{decoder_forward.1} parent=1 // pred_check_branch
      %23 = sbr.rel (0) target = $region5
    $region4: #{decoder_forward.1} parent=1 // pred_region
      _
    $region5: #{decoder_forward.1} parent=1 // pred_fallthru
      _
    // Predicated region
    $region6: #{decoder_forward.1} parent=1 // pred_check
      _
    $region7: #{decoder_forward.1} parent=1 // pred_check_branch
      %25 = sbr.rel (0) target = $region9
    $region8: #{decoder_forward.1} parent=1 // pred_region
      _
    $region9: #{decoder_forward.1} parent=1 // pred_fallthru
      _
    // Predicated region
    $region10: #{decoder_forward.1} parent=1 // pred_check
      _
    $region11: #{decoder_forward.1} parent=1 // pred_check_branch
      %27 = sbr.rel (0) target = $region13
    $region12: #{decoder_forward.1} parent=1 // pred_region
      _
    $region13: #{decoder_forward.1} parent=1 // pred_fallthru
      _
    // Predicated region
    $region14: #{decoder_forward.1} parent=1 // pred_check
      _
    $region15: #{decoder_forward.1} parent=1 // pred_check_branch
      %29 = sbr.rel (0) target = $region17
    $region16: #{decoder_forward.1} parent=1 // pred_region
      _
    $region17: #{decoder_forward.1} parent=1 // pred_fallthru
      _
    // Predicated region
    $region18: #{decoder_forward.1} parent=1 // pred_check
      _
    $region19: #{decoder_forward.1} parent=1 // pred_check_branch
      %31 = sbr.rel (0) target = $region21
    $region20: #{decoder_forward.1} parent=1 // pred_region
      _
    $region21: #{decoder_forward.1} parent=1 // pred_fallthru
      _
    // Predicated region
    $region22: #{decoder_forward.1} parent=1 // pred_check
      _
    $region23: #{decoder_forward.1} parent=1 // pred_check_branch
      %33 = sbr.rel (0) target = $region25
    $region24: #{decoder_forward.1} parent=1 // pred_region
      _
    $region25: #{decoder_forward.1} parent=1 // pred_fallthru
      _
    // Predicated region
    $region26: #{decoder_forward.1} parent=1 // pred_check
      _
    $region27: #{decoder_forward.1} parent=1 // pred_check_branch
      %35 = sbr.rel (0) target = $region29
    $region28: #{decoder_forward.1} parent=1 // pred_region
      _
    $region29: #{decoder_forward.1} parent=1 // pred_fallthru
      _
    // Predicated region
    $region30: #{decoder_forward.1} parent=1 // pred_check
      _
    $region31: #{decoder_forward.1} parent=1 // pred_check_branch
      %37 = sbr.rel (0) target = $region33
    $region32: #{decoder_forward.1} parent=1 // pred_region
      _
    $region33: #{decoder_forward.1} parent=1 // pred_fallthru
      _
    // Predicated region
    $region34: #{decoder_forward.1} parent=1 // pred_check
      _
    $region35: #{decoder_forward.1} parent=1 // pred_check_branch
      %39 = sbr.rel (0) target = $region37
    $region36: #{decoder_forward.1} parent=1 // pred_region
      _
    $region37: #{decoder_forward.1} parent=1 // pred_fallthru
      _
    // Predicated region
    $region38: #{decoder_forward.1} parent=1 // pred_check
      _
    $region39: #{decoder_forward.1} parent=1 // pred_check_branch
      %41 = sbr.rel (0) target = $region41
    $region40: #{decoder_forward.1} parent=1 // pred_region
      _
    $region41: #{decoder_forward.1} parent=1 // pred_fallthru
      _
    // Predicated region
    $region42: #{decoder_forward.1} parent=1 // pred_check
      _
    $region43: #{decoder_forward.1} parent=1 // pred_check_branch
      %43 = sbr.rel (0) target = $region45
    $region44: #{decoder_forward.1} parent=1 // pred_region
      _
    $region45: #{decoder_forward.1} parent=1 // pred_fallthru
      _
    // Predicated region
    $region46: #{decoder_forward.1} parent=1 // pred_check
      _
    $region47: #{decoder_forward.1} parent=1 // pred_check_branch
      %45 = sbr.rel (0) target = $region49
    $region48: #{decoder_forward.1} parent=1 // pred_region
      _
    $region49: #{decoder_forward.1} parent=1 // pred_fallthru
      _
    %v46 = vld [vmem:[%s0] sm:$0x3]
    %v47 = vld [vmem:[%s1] sm:$0x3]
    %v48 = vld [vmem:[%s2] sm:$0xff]
    %v49 = vld [vmem:[%s2 + $0x8] sm:$0xff]
    %v50 = vld [vmem:[%s2 + $0x10] sm:$0xff]
    %v51 = vld [vmem:[%s2 + $0x18] sm:$0xff]
    %v52 = vld [vmem:[%s2 + $0x20] sm:$0xff]
    %v53 = vld [vmem:[%s2 + $0x28] sm:$0xff]
    %v54 = vld [vmem:[%s2 + $0x30] sm:$0xff]
    %v55 = vld [vmem:[%s2 + $0x38] sm:$0xff]
    %v56 = vld [vmem:[%s2 + $0x40] sm:$0xff]
    %v57 = vld [vmem:[%s2 + $0x48] sm:$0xff]
    %v58 = vld [vmem:[%s2 + $0x50] sm:$0xff]
    %v59 = vld [vmem:[%s2 + $0x58] sm:$0xff]
    %v60 = vld [vmem:[%s2 + $0x60] sm:$0xff]
    %v61 = vld [vmem:[%s2 + $0x68] sm:$0xff]
    %v62 = vld [vmem:[%s2 + $0x70] sm:$0xff]
    %v63 = vld [vmem:[%s2 + $0x78] sm:$0xff]
    %v64 = vld [vmem:[%s2 + $0x80] sm:$0xff]
    %v65 = vld [vmem:[%s2 + $0x88] sm:$0xff]
    %v66 = vld [vmem:[%s2 + $0x90] sm:$0xff]
    %v67 = vld [vmem:[%s2 + $0x98] sm:$0xff]
    %v68 = vld [vmem:[%s2 + $0xa0] sm:$0xff]
    %v69 = vld [vmem:[%s2 + $0xa8] sm:$0xff]
    %v70 = vld [vmem:[%s2 + $0xb0] sm:$0xff]
    %v71 = vld [vmem:[%s2 + $0xb8] sm:$0xff]
    %v72 = vld [vmem:[%s2 + $0xc0] sm:$0xff]
    %v73 = vld [vmem:[%s2 + $0xc8] sm:$0xff]
    %v74 = vld [vmem:[%s2 + $0xd0] sm:$0xff]
    %v75 = vld [vmem:[%s2 + $0xd8] sm:$0xff]
    %v76 = vld [vmem:[%s2 + $0xe0] sm:$0xff]
    %v77 = vld [vmem:[%s2 + $0xe8] sm:$0xff]
    %v78 = vld [vmem:[%s2 + $0xf0] sm:$0xff]
    %v79 = vld [vmem:[%s2 + $0xf8] sm:$0xff]
    %v80 = vld [vmem:[%s3] sm:$0xff]
    %v81 = vld [vmem:[%s3 + $0x8] sm:$0xff]
    %v82 = vld [vmem:[%s3 + $0x10] sm:$0xff]
    %v83 = vld [vmem:[%s3 + $0x18] sm:$0xff]
    %v84 = vld [vmem:[%s3 + $0x20] sm:$0xff]
    %v85 = vld [vmem:[%s3 + $0x28] sm:$0xff]
    %v86 = vld [vmem:[%s3 + $0x30] sm:$0xff]
    %v87 = vld [vmem:[%s3 + $0x38] sm:$0xff]
    %v88 = vld [vmem:[%s4] sm:$0x3]
    %v89 = vld [vmem:[%s5] sm:$0xff]
    %v90 = vld [vmem:[%s5 + $0x8] sm:$0xff]
    %v91 = vld [vmem:[%s5 + $0x10] sm:$0xff]
    %v92 = vld [vmem:[%s5 + $0x18] sm:$0xff]
    %v93 = vld [vmem:[%s5 + $0x20] sm:$0xff]
    %v94 = vld [vmem:[%s5 + $0x28] sm:$0xff]
    %v95 = vld [vmem:[%s5 + $0x30] sm:$0xff]
    %v96 = vld [vmem:[%s5 + $0x38] sm:$0xff]
    %v97 = vld [vmem:[%s6] sm:$0x3]
    %v98 = vld [vmem:[%s7] sm:$0xff]
    %v99 = vld [vmem:[%s7 + $0x8] sm:$0xff]
    %v100 = vld [vmem:[%s7 + $0x10] sm:$0xff]
    %v101 = vld [vmem:[%s7 + $0x18] sm:$0xff]
    %v102 = vld [vmem:[%s8] sm:$0xff]
    %v103 = vld [vmem:[%s8 + $0x8] sm:$0xff]
    %v104 = vld [vmem:[%s8 + $0x10] sm:$0xff]
    %v105 = vld [vmem:[%s8 + $0x18] sm:$0xff]
    %v106 = vld [vmem:[%s9] sm:$0x1]
    %v107 = vld [vmem:[%s10] sm:$0xff]
    %v108 = vld [vmem:[%s10 + $0x8] sm:$0xff]
    %v109 = vld [vmem:[%s10 + $0x10] sm:$0xff]
    %v110 = vld [vmem:[%s10 + $0x18] sm:$0xff]
    %v111 = vld [vmem:[%s11] sm:$0x1]
    %v113 = vlaneseq
    %v114 = vshrl.u32 %v113, 7
    %v115 = vsub.s32 0, %v114
    %v116 = vrot.slane %v88, %v115
    %v117 = vlaneseq
    %v118 = vshrl.u32 %v117, 7
    %v119 = vsub.s32 1, %v118
    %v120 = vrot.slane %v88, %v119
    %vm123 = vcmask 261120
    %v125 = vsel %vm123, %v46, 0
    %127 = vmatprep.subr.mxu0 %v81
    %128 = vmatpush1.msra.mxu0 %v80
    %129 = vmatprep.subr.mxu0 %v83
    %130 = vmatpush1.msra.mxu0 %v82
    %131 = vmatprep.subr.mxu0 %v85
    %132 = vmatpush1.msra.mxu0 %v84
    %133 = vmatprep.subr.mxu0 %v87
    %134 = vmatpush1.msra.mxu0 %v86
    %135 = vmatprep.subr.mxu0 0.0
    %136 = vmatpush1.msra.mxu0 0.0
    %137 = vmatprep.subr.mxu0 0.0
    %138 = vmatpush1.msra.mxu0 0.0
    %139 = vmatprep.subr.mxu0 0.0
    %140 = vmatpush1.msra.mxu0 0.0
    %141 = vmatprep.subr.mxu0 0.0
    %142 = vmatpush1.msra.mxu0 0.0
    %143 = vmatprep.subr.mxu0 0.0
    %144 = vmatpush1.msra.mxu0 0.0
    %145 = vmatprep.subr.mxu0 0.0
    %146 = vmatpush1.msra.mxu0 0.0
    %147 = vmatprep.subr.mxu0 0.0
    %148 = vmatpush1.msra.mxu0 0.0
    %149 = vmatprep.subr.mxu0 0.0
    %150 = vmatpush1.msra.mxu0 0.0
    %151 = vmatprep.subr.mxu0 0.0
    %152 = vmatpush1.msra.mxu0 0.0
    %153 = vmatprep.subr.mxu0 0.0
    %154 = vmatpush1.msra.mxu0 0.0
    %155 = vmatprep.subr.mxu0 0.0
    %156 = vmatpush1.msra.mxu0 0.0
    %157 = vmatprep.subr.mxu0 0.0
    %158 = vmatpush1.msra.mxu0 0.0
    %159 = vmatprep.subr.mxu0 0.0
    %160 = vmatpush1.msra.mxu0 0.0
    %161 = vmatprep.subr.mxu0 0.0
    %162 = vmatpush1.msra.mxu0 0.0
    %163 = vmatprep.subr.mxu0 0.0
    %164 = vmatpush1.msra.mxu0 0.0
    %165 = vmatprep.subr.mxu0 0.0
    %166 = vmatpush1.msra.mxu0 0.0
    %167 = vmatprep.subr.mxu0 0.0
    %168 = vmatpush1.msra.mxu0 0.0
    %169 = vmatprep.subr.mxu0 0.0
    %170 = vmatpush1.msra.mxu0 0.0
    %171 = vmatprep.subr.mxu0 0.0
    %172 = vmatpush1.msra.mxu0 0.0
    %173 = vmatprep.subr.mxu0 0.0
    %174 = vmatpush1.msra.mxu0 0.0
    %175 = vmatprep.subr.mxu0 0.0
    %176 = vmatpush1.msra.mxu0 0.0
    %177 = vmatprep.subr.mxu0 0.0
    %178 = vmatpush1.msra.mxu0 0.0
    %179 = vmatprep.subr.mxu0 0.0
    %180 = vmatpush1.msra.mxu0 0.0
    %181 = vmatprep.subr.mxu0 0.0
    %182 = vmatpush1.msra.mxu0 0.0
    %183 = vmatprep.subr.mxu0 0.0
    %184 = vmatpush1.msra.mxu0 0.0
    %185 = vmatprep.subr.mxu0 0.0
    %186 = vmatpush1.msra.mxu0 0.0
    %187 = vmatprep.subr.mxu0 0.0
    %188 = vmatpush1.msra.mxu0 0.0
    %189 = vmatprep.subr.mxu0 0.0
    %190 = vmatpush1.msra.mxu0 0.0
    %191 = vmatprep.mubr.f32.mxu0 0.0
    %192 = vmatmul.mubr.f32.gmra.mrb[0].mxu0 %v125
    %v193 = vpop.f32.mrb[0].mxu0
    %v194 = vadd.f32 %v116, %v193
    %v195 = vpop.f32.mrb[0].mxu0
    %v196 = vadd.f32 %v120, %v195
    %197 = vdwg.mxu0
    %v199 = vlaneseq
    %v200 = vshrl.u32 %v199, 7
    %v201 = vsub.s32 0, %v200
    %v202 = vrot.slane %v97, %v201
    %v203 = vlaneseq
    %v204 = vshrl.u32 %v203, 7
    %v205 = vsub.s32 1, %v204
    %v206 = vrot.slane %v97, %v205
    %v210 = vsel %vm123, %v47, 0
    %212 = vmatprep.subr.mxu0 %v90
    %213 = vmatpush1.msra.mxu0 %v89
    %214 = vmatprep.subr.mxu0 %v92
    %215 = vmatpush1.msra.mxu0 %v91
    %216 = vmatprep.subr.mxu0 %v94
    %217 = vmatpush1.msra.mxu0 %v93
    %218 = vmatprep.subr.mxu0 %v96
    %219 = vmatpush1.msra.mxu0 %v95
    %220 = vmatprep.subr.mxu0 0.0
    %221 = vmatpush1.msra.mxu0 0.0
    %222 = vmatprep.subr.mxu0 0.0
    %223 = vmatpush1.msra.mxu0 0.0
    %224 = vmatprep.subr.mxu0 0.0
    %225 = vmatpush1.msra.mxu0 0.0
    %226 = vmatprep.subr.mxu0 0.0
    %227 = vmatpush1.msra.mxu0 0.0
    %228 = vmatprep.subr.mxu0 0.0
    %229 = vmatpush1.msra.mxu0 0.0
    %230 = vmatprep.subr.mxu0 0.0
    %231 = vmatpush1.msra.mxu0 0.0
    %232 = vmatprep.subr.mxu0 0.0
    %233 = vmatpush1.msra.mxu0 0.0
    %234 = vmatprep.subr.mxu0 0.0
    %235 = vmatpush1.msra.mxu0 0.0
    %236 = vmatprep.subr.mxu0 0.0
    %237 = vmatpush1.msra.mxu0 0.0
    %238 = vmatprep.subr.mxu0 0.0
    %239 = vmatpush1.msra.mxu0 0.0
    %240 = vmatprep.subr.mxu0 0.0
    %241 = vmatpush1.msra.mxu0 0.0
    %242 = vmatprep.subr.mxu0 0.0
    %243 = vmatpush1.msra.mxu0 0.0
    %244 = vmatprep.subr.mxu0 0.0
    %245 = vmatpush1.msra.mxu0 0.0
    %246 = vmatprep.subr.mxu0 0.0
    %247 = vmatpush1.msra.mxu0 0.0
    %248 = vmatprep.subr.mxu0 0.0
    %249 = vmatpush1.msra.mxu0 0.0
    %250 = vmatprep.subr.mxu0 0.0
    %251 = vmatpush1.msra.mxu0 0.0
    %252 = vmatprep.subr.mxu0 0.0
    %253 = vmatpush1.msra.mxu0 0.0
    %254 = vmatprep.subr.mxu0 0.0
    %255 = vmatpush1.msra.mxu0 0.0
    %256 = vmatprep.subr.mxu0 0.0
    %257 = vmatpush1.msra.mxu0 0.0
    %258 = vmatprep.subr.mxu0 0.0
    %259 = vmatpush1.msra.mxu0 0.0
    %260 = vmatprep.subr.mxu0 0.0
    %261 = vmatpush1.msra.mxu0 0.0
    %262 = vmatprep.subr.mxu0 0.0
    %263 = vmatpush1.msra.mxu0 0.0
    %264 = vmatprep.subr.mxu0 0.0
    %265 = vmatpush1.msra.mxu0 0.0
    %266 = vmatprep.subr.mxu0 0.0
    %267 = vmatpush1.msra.mxu0 0.0
    %268 = vmatprep.subr.mxu0 0.0
    %269 = vmatpush1.msra.mxu0 0.0
    %270 = vmatprep.subr.mxu0 0.0
    %271 = vmatpush1.msra.mxu0 0.0
    %272 = vmatprep.subr.mxu0 0.0
    %273 = vmatpush1.msra.mxu0 0.0
    %274 = vmatprep.subr.mxu0 0.0
    %275 = vmatpush1.msra.mxu0 0.0
    %276 = vmatprep.mubr.f32.mxu0 0.0
    %277 = vmatmul.mubr.f32.gmra.mrb[0].mxu0 %v210
    %v278 = vpop.f32.mrb[0].mxu0
    %v279 = vadd.f32 %v202, %v278
    %v280 = vpop.f32.mrb[0].mxu0
    %v281 = vadd.f32 %v206, %v280
    %282 = vdwg.mxu0
    %v283 = vadd.f32 %v194, %v279
    %vm284 = vcmask 1041408
    %v285 = vsel %vm284, %v283, -inf
    %286 = vmax.xlane.f32.xlu0 %v285
    %v287 = vpop.xlane.xlu0 %286
    %v288 = vsub.f32 %v283, %v287
    %v289 = vmul.f32 %v288, 1.442695
    %v290 = vpow.pop %v289
    %v291 = vsel %vm284, %v290, 0.0
    %292 = vadd.xlane.f32.xlu0 %v291
    %v293 = vpop.xlane.xlu0 %292
    %v294 = vrcp.pop %v293
    %v295 = vmul.f32 %v290, %v294
    %v298 = vunpack.c.l.s4 1966171168
    %v299 = vunpack.c.0.s8 %v298
    %v300 = vlaneseq
    %v301 = vshrl.u32 %v300, 7
    %v302 = vsub.s32 %v299, %v301
    %v303 = vrot.slane %v295, %v302
    %v304 = vcombine.high %v303, %v303
    %v306 = vunpack.c.l.s4 1966171168
    %v307 = vunpack.c.0.s8 %v306
    %v308 = vlaneseq
    %v309 = vshrl.u32 %v308, 7
    %v310 = vsub.s32 %v307, %v309
    %v311 = vrot.slane %v303, %v310
    %v313 = vunpack.c.l.s4 1966171168
    %v314 = vunpack.c.0.s8 %v313
    %v315 = vlaneseq
    %v316 = vshrl.u32 %v315, 7
    %v317 = vsub.s32 %v314, %v316
    %v318 = vrot.slane %v304, %v317
    %321 = vmatprep.subr.mxu0 0.0
    %322 = vmatpush1.msra.mxu0 %v48
    %323 = vmatprep.subr.mxu0 0.0
    %324 = vmatpush1.msra.mxu0 %v49
    %325 = vmatprep.subr.mxu0 0.0
    %326 = vmatpush1.msra.mxu0 %v50
    %327 = vmatprep.subr.mxu0 0.0
    %328 = vmatpush1.msra.mxu0 %v51
    %329 = vmatprep.subr.mxu0 0.0
    %330 = vmatpush1.msra.mxu0 %v52
    %331 = vmatprep.subr.mxu0 0.0
    %332 = vmatpush1.msra.mxu0 %v53
    %333 = vmatprep.subr.mxu0 0.0
    %334 = vmatpush1.msra.mxu0 %v54
    %335 = vmatprep.subr.mxu0 0.0
    %336 = vmatpush1.msra.mxu0 %v55
    %337 = vmatprep.subr.mxu0 0.0
    %338 = vmatpush1.msra.mxu0 %v56
    %339 = vmatprep.subr.mxu0 0.0
    %340 = vmatpush1.msra.mxu0 %v57
    %341 = vmatprep.subr.mxu0 0.0
    %342 = vmatpush1.msra.mxu0 %v58
    %343 = vmatprep.subr.mxu0 0.0
    %344 = vmatpush1.msra.mxu0 %v59
    %345 = vmatprep.subr.mxu0 0.0
    %346 = vmatpush1.msra.mxu0 %v60
    %347 = vmatprep.subr.mxu0 0.0
    %348 = vmatpush1.msra.mxu0 %v61
    %349 = vmatprep.subr.mxu0 0.0
    %350 = vmatpush1.msra.mxu0 %v62
    %351 = vmatprep.subr.mxu0 0.0
    %352 = vmatpush1.msra.mxu0 %v63
    %353 = vmatprep.subr.mxu0 0.0
    %354 = vmatpush1.msra.mxu0 0.0
    %355 = vmatprep.subr.mxu0 0.0
    %356 = vmatpush1.msra.mxu0 0.0
    %357 = vmatprep.subr.mxu0 0.0
    %358 = vmatpush1.msra.mxu0 0.0
    %359 = vmatprep.subr.mxu0 0.0
    %360 = vmatpush1.msra.mxu0 0.0
    %361 = vmatprep.subr.mxu0 0.0
    %362 = vmatpush1.msra.mxu0 0.0
    %363 = vmatprep.subr.mxu0 0.0
    %364 = vmatpush1.msra.mxu0 0.0
    %365 = vmatprep.subr.mxu0 0.0
    %366 = vmatpush1.msra.mxu0 0.0
    %367 = vmatprep.subr.mxu0 0.0
    %368 = vmatpush1.msra.mxu0 0.0
    %369 = vmatprep.subr.mxu0 0.0
    %370 = vmatpush1.msra.mxu0 0.0
    %371 = vmatprep.subr.mxu0 0.0
    %372 = vmatpush1.msra.mxu0 0.0
    %373 = vmatprep.subr.mxu0 0.0
    %374 = vmatpush1.msra.mxu0 0.0
    %375 = vmatprep.subr.mxu0 0.0
    %376 = vmatpush1.msra.mxu0 0.0
    %377 = vmatprep.subr.mxu0 0.0
    %378 = vmatpush1.msra.mxu0 0.0
    %379 = vmatprep.subr.mxu0 0.0
    %380 = vmatpush1.msra.mxu0 0.0
    %381 = vmatprep.subr.mxu0 0.0
    %382 = vmatpush1.msra.mxu0 0.0
    %383 = vmatprep.subr.mxu0 0.0
    %384 = vmatpush1.msra.mxu0 0.0
    %385 = vmatprep.mubr.f32.mxu0 0.0
    %386 = vmatmul.mubr.f32.gmra.mrb[0].mxu0 %v311
    %v387 = vpop.f32.mrb[0].mxu0
    %v388 = vadd.f32 0.0, %v387
    %v389 = vpop.f32.mrb[0].mxu0
    %390 = vdwg.mxu0
    %391 = vmatprep.subr.mxu0 0.0
    %392 = vmatpush1.msra.mxu0 %v64
    %393 = vmatprep.subr.mxu0 0.0
    %394 = vmatpush1.msra.mxu0 %v65
    %395 = vmatprep.subr.mxu0 0.0
    %396 = vmatpush1.msra.mxu0 %v66
    %397 = vmatprep.subr.mxu0 0.0
    %398 = vmatpush1.msra.mxu0 %v67
    %399 = vmatprep.subr.mxu0 0.0
    %400 = vmatpush1.msra.mxu0 %v68
    %401 = vmatprep.subr.mxu0 0.0
    %402 = vmatpush1.msra.mxu0 %v69
    %403 = vmatprep.subr.mxu0 0.0
    %404 = vmatpush1.msra.mxu0 %v70
    %405 = vmatprep.subr.mxu0 0.0
    %406 = vmatpush1.msra.mxu0 %v71
    %407 = vmatprep.subr.mxu0 0.0
    %408 = vmatpush1.msra.mxu0 %v72
    %409 = vmatprep.subr.mxu0 0.0
    %410 = vmatpush1.msra.mxu0 %v73
    %411 = vmatprep.subr.mxu0 0.0
    %412 = vmatpush1.msra.mxu0 %v74
    %413 = vmatprep.subr.mxu0 0.0
    %414 = vmatpush1.msra.mxu0 %v75
    %415 = vmatprep.subr.mxu0 0.0
    %416 = vmatpush1.msra.mxu0 %v76
    %417 = vmatprep.subr.mxu0 0.0
    %418 = vmatpush1.msra.mxu0 %v77
    %419 = vmatprep.subr.mxu0 0.0
    %420 = vmatpush1.msra.mxu0 %v78
    %421 = vmatprep.subr.mxu0 0.0
    %422 = vmatpush1.msra.mxu0 %v79
    %423 = vmatprep.subr.mxu0 0.0
    %424 = vmatpush1.msra.mxu0 0.0
    %425 = vmatprep.subr.mxu0 0.0
    %426 = vmatpush1.msra.mxu0 0.0
    %427 = vmatprep.subr.mxu0 0.0
    %428 = vmatpush1.msra.mxu0 0.0
    %429 = vmatprep.subr.mxu0 0.0
    %430 = vmatpush1.msra.mxu0 0.0
    %431 = vmatprep.subr.mxu0 0.0
    %432 = vmatpush1.msra.mxu0 0.0
    %433 = vmatprep.subr.mxu0 0.0
    %434 = vmatpush1.msra.mxu0 0.0
    %435 = vmatprep.subr.mxu0 0.0
    %436 = vmatpush1.msra.mxu0 0.0
    %437 = vmatprep.subr.mxu0 0.0
    %438 = vmatpush1.msra.mxu0 0.0
    %439 = vmatprep.subr.mxu0 0.0
    %440 = vmatpush1.msra.mxu0 0.0
    %441 = vmatprep.subr.mxu0 0.0
    %442 = vmatpush1.msra.mxu0 0.0
    %443 = vmatprep.subr.mxu0 0.0
    %444 = vmatpush1.msra.mxu0 0.0
    %445 = vmatprep.subr.mxu0 0.0
    %446 = vmatpush1.msra.mxu0 0.0
    %447 = vmatprep.subr.mxu0 0.0
    %448 = vmatpush1.msra.mxu0 0.0
    %449 = vmatprep.subr.mxu0 0.0
    %450 = vmatpush1.msra.mxu0 0.0
    %451 = vmatprep.subr.mxu0 0.0
    %452 = vmatpush1.msra.mxu0 0.0
    %453 = vmatprep.subr.mxu0 0.0
    %454 = vmatpush1.msra.mxu0 0.0
    %455 = vmatprep.mubr.f32.mxu0 0.0
    %456 = vmatmul.mubr.f32.gmra.mrb[0].mxu0 %v318
    %v457 = vpop.f32.mrb[0].mxu0
    %v458 = vadd.f32 0.0, %v457
    %v459 = vpop.f32.mrb[0].mxu0
    %460 = vdwg.mxu0
    %v463 = vrot.slane %v458, 7
    %vm464 = vcmask 1041409
    %v465 = vsel %vm464, %v463, %v388
    %v466 = vsel %vm123, %v465, 0
    %468 = vmatprep.subr.mxu0 0.0
    %469 = vmatpush1.msra.mxu0 %v98
    %470 = vmatprep.subr.mxu0 0.0
    %471 = vmatpush1.msra.mxu0 %v99
    %472 = vmatprep.subr.mxu0 0.0
    %473 = vmatpush1.msra.mxu0 %v100
    %474 = vmatprep.subr.mxu0 0.0
    %475 = vmatpush1.msra.mxu0 %v101
    %476 = vmatprep.subr.mxu0 0.0
    %477 = vmatpush1.msra.mxu0 0.0
    %478 = vmatprep.subr.mxu0 0.0
    %479 = vmatpush1.msra.mxu0 0.0
    %480 = vmatprep.subr.mxu0 0.0
    %481 = vmatpush1.msra.mxu0 0.0
    %482 = vmatprep.subr.mxu0 0.0
    %483 = vmatpush1.msra.mxu0 0.0
    %484 = vmatprep.subr.mxu0 0.0
    %485 = vmatpush1.msra.mxu0 0.0
    %486 = vmatprep.subr.mxu0 0.0
    %487 = vmatpush1.msra.mxu0 0.0
    %488 = vmatprep.subr.mxu0 0.0
    %489 = vmatpush1.msra.mxu0 0.0
    %490 = vmatprep.subr.mxu0 0.0
    %491 = vmatpush1.msra.mxu0 0.0
    %492 = vmatprep.subr.mxu0 0.0
    %493 = vmatpush1.msra.mxu0 0.0
    %494 = vmatprep.subr.mxu0 0.0
    %495 = vmatpush1.msra.mxu0 0.0
    %496 = vmatprep.subr.mxu0 0.0
    %497 = vmatpush1.msra.mxu0 0.0
    %498 = vmatprep.subr.mxu0 0.0
    %499 = vmatpush1.msra.mxu0 0.0
    %500 = vmatprep.subr.mxu0 0.0
    %501 = vmatpush1.msra.mxu0 0.0
    %502 = vmatprep.subr.mxu0 0.0
    %503 = vmatpush1.msra.mxu0 0.0
    %504 = vmatprep.subr.mxu0 0.0
    %505 = vmatpush1.msra.mxu0 0.0
    %506 = vmatprep.subr.mxu0 0.0
    %507 = vmatpush1.msra.mxu0 0.0
    %508 = vmatprep.subr.mxu0 0.0
    %509 = vmatpush1.msra.mxu0 0.0
    %510 = vmatprep.subr.mxu0 0.0
    %511 = vmatpush1.msra.mxu0 0.0
    %512 = vmatprep.subr.mxu0 0.0
    %513 = vmatpush1.msra.mxu0 0.0
    %514 = vmatprep.subr.mxu0 0.0
    %515 = vmatpush1.msra.mxu0 0.0
    %516 = vmatprep.subr.mxu0 0.0
    %517 = vmatpush1.msra.mxu0 0.0
    %518 = vmatprep.subr.mxu0 0.0
    %519 = vmatpush1.msra.mxu0 0.0
    %520 = vmatprep.subr.mxu0 0.0
    %521 = vmatpush1.msra.mxu0 0.0
    %522 = vmatprep.subr.mxu0 0.0
    %523 = vmatpush1.msra.mxu0 0.0
    %524 = vmatprep.subr.mxu0 0.0
    %525 = vmatpush1.msra.mxu0 0.0
    %526 = vmatprep.subr.mxu0 0.0
    %527 = vmatpush1.msra.mxu0 0.0
    %528 = vmatprep.subr.mxu0 0.0
    %529 = vmatpush1.msra.mxu0 0.0
    %530 = vmatprep.subr.mxu0 0.0
    %531 = vmatpush1.msra.mxu0 0.0
    %532 = vmatprep.mubr.f32.mxu0 0.0
    %533 = vmatmul.mubr.f32.gmra.mrb[0].mxu0 %v466
    %v534 = vpop.f32.mrb[0].mxu0
    %v535 = vadd.f32 0.0, %v534
    %v536 = vpop.f32.mrb[0].mxu0
    %537 = vdwg.mxu0
    %v538 = vadd.f32 %v196, %v535
    %v539 = vmax.f32 %v538, 0.0
    %v541 = vlaneseq
    %v542 = vshrl.u32 %v541, 7
    %v543 = vsub.s32 0, %v542
    %v544 = vrot.slane %v106, %v543
    %v547 = vsel %vm123, %v539, 0
    %549 = vmatprep.subr.mxu0 0.0
    %550 = vmatpush1.msra.mxu0 %v102
    %551 = vmatprep.subr.mxu0 0.0
    %552 = vmatpush1.msra.mxu0 %v103
    %553 = vmatprep.subr.mxu0 0.0
    %554 = vmatpush1.msra.mxu0 %v104
    %555 = vmatprep.subr.mxu0 0.0
    %556 = vmatpush1.msra.mxu0 %v105
    %557 = vmatprep.subr.mxu0 0.0
    %558 = vmatpush1.msra.mxu0 0.0
    %559 = vmatprep.subr.mxu0 0.0
    %560 = vmatpush1.msra.mxu0 0.0
    %561 = vmatprep.subr.mxu0 0.0
    %562 = vmatpush1.msra.mxu0 0.0
    %563 = vmatprep.subr.mxu0 0.0
    %564 = vmatpush1.msra.mxu0 0.0
    %565 = vmatprep.subr.mxu0 0.0
    %566 = vmatpush1.msra.mxu0 0.0
    %567 = vmatprep.subr.mxu0 0.0
    %568 = vmatpush1.msra.mxu0 0.0
    %569 = vmatprep.subr.mxu0 0.0
    %570 = vmatpush1.msra.mxu0 0.0
    %571 = vmatprep.subr.mxu0 0.0
    %572 = vmatpush1.msra.mxu0 0.0
    %573 = vmatprep.subr.mxu0 0.0
    %574 = vmatpush1.msra.mxu0 0.0
    %575 = vmatprep.subr.mxu0 0.0
    %576 = vmatpush1.msra.mxu0 0.0
    %577 = vmatprep.subr.mxu0 0.0
    %578 = vmatpush1.msra.mxu0 0.0
    %579 = vmatprep.subr.mxu0 0.0
    %580 = vmatpush1.msra.mxu0 0.0
    %581 = vmatprep.subr.mxu0 0.0
    %582 = vmatpush1.msra.mxu0 0.0
    %583 = vmatprep.subr.mxu0 0.0
    %584 = vmatpush1.msra.mxu0 0.0
    %585 = vmatprep.subr.mxu0 0.0
    %586 = vmatpush1.msra.mxu0 0.0
    %587 = vmatprep.subr.mxu0 0.0
    %588 = vmatpush1.msra.mxu0 0.0
    %589 = vmatprep.subr.mxu0 0.0
    %590 = vmatpush1.msra.mxu0 0.0
    %591 = vmatprep.subr.mxu0 0.0
    %592 = vmatpush1.msra.mxu0 0.0
    %593 = vmatprep.subr.mxu0 0.0
    %594 = vmatpush1.msra.mxu0 0.0
    %595 = vmatprep.subr.mxu0 0.0
    %596 = vmatpush1.msra.mxu0 0.0
    %597 = vmatprep.subr.mxu0 0.0
    %598 = vmatpush1.msra.mxu0 0.0
    %599 = vmatprep.subr.mxu0 0.0
    %600 = vmatpush1.msra.mxu0 0.0
    %601 = vmatprep.subr.mxu0 0.0
    %602 = vmatpush1.msra.mxu0 0.0
    %603 = vmatprep.subr.mxu0 0.0
    %604 = vmatpush1.msra.mxu0 0.0
    %605 = vmatprep.subr.mxu0 0.0
    %606 = vmatpush1.msra.mxu0 0.0
    %607 = vmatprep.subr.mxu0 0.0
    %608 = vmatpush1.msra.mxu0 0.0
    %609 = vmatprep.subr.mxu0 0.0
    %610 = vmatpush1.msra.mxu0 0.0
    %611 = vmatprep.subr.mxu0 0.0
    %612 = vmatpush1.msra.mxu0 0.0
    %613 = vmatprep.mubr.f32.mxu0 0.0
    %614 = vmatmul.mubr.f32.gmra.mrb[0].mxu0 %v547
    %v615 = vpop.f32.mrb[0].mxu0
    %v616 = vadd.f32 %v544, %v615
    %v617 = vpop.f32.mrb[0].mxu0
    %618 = vdwg.mxu0
    %v619 = vadd.f32 %v616, %v281
    %v620 = vxor.u32 %v619, 2147483648
    %v621 = vmul.f32 %v620, 1.442695
    %v622 = vpow.pop %v621
    %v623 = vadd.f32 %v622, 1.0
    %v624 = vrcp.pop %v623
    %v625 = vmul.f32 1.0, %v624
    %627 = vrot.lane.b32.xlu0 %v281, 64
    %v628 = vpop.permute.xlu0 %627
    %v630 = vmul.f32 %v625, %v628
    %632 = vrot.lane.b32.xlu0 %v630, 64
    %v633 = vpop.permute.xlu0 %632
    %v635 = vadd.f32 %v616, %v633
    %v636 = vtanh.pop %v635
    %v637 = vsub.f32 1.0, %v625
    %639 = vrot.lane.b32.xlu0 %v636, 96
    %v640 = vpop.permute.xlu0 %639
    %v642 = vmul.f32 %v637, %v640
    %643 = vrot.lane.b32.xlu0 %v47, 32
    %v644 = vpop.permute.xlu0 %643
    %v646 = vmul.f32 %v625, %v644
    %v647 = vadd.f32 %v642, %v646
    %v649 = vlaneseq
    %v650 = vshrl.u32 %v649, 7
    %v651 = vsub.s32 0, %v650
    %v652 = vrot.slane %v111, %v651
    %655 = vrot.lane.b32.xlu0 %v647, 96
    %v656 = vpop.permute.xlu0 %655
    %v657 = vsel %vm123, %v656, 0
    %659 = vmatprep.subr.mxu0 0.0
    %660 = vmatpush1.msra.mxu0 %v107
    %661 = vmatprep.subr.mxu0 0.0
    %662 = vmatpush1.msra.mxu0 %v108
    %663 = vmatprep.subr.mxu0 0.0
    %664 = vmatpush1.msra.mxu0 %v109
    %665 = vmatprep.subr.mxu0 0.0
    %666 = vmatpush1.msra.mxu0 %v110
    %667 = vmatprep.subr.mxu0 0.0
    %668 = vmatpush1.msra.mxu0 0.0
    %669 = vmatprep.subr.mxu0 0.0
    %670 = vmatpush1.msra.mxu0 0.0
    %671 = vmatprep.subr.mxu0 0.0
    %672 = vmatpush1.msra.mxu0 0.0
    %673 = vmatprep.subr.mxu0 0.0
    %674 = vmatpush1.msra.mxu0 0.0
    %675 = vmatprep.subr.mxu0 0.0
    %676 = vmatpush1.msra.mxu0 0.0
    %677 = vmatprep.subr.mxu0 0.0
    %678 = vmatpush1.msra.mxu0 0.0
    %679 = vmatprep.subr.mxu0 0.0
    %680 = vmatpush1.msra.mxu0 0.0
    %681 = vmatprep.subr.mxu0 0.0
    %682 = vmatpush1.msra.mxu0 0.0
    %683 = vmatprep.subr.mxu0 0.0
    %684 = vmatpush1.msra.mxu0 0.0
    %685 = vmatprep.subr.mxu0 0.0
    %686 = vmatpush1.msra.mxu0 0.0
    %687 = vmatprep.subr.mxu0 0.0
    %688 = vmatpush1.msra.mxu0 0.0
    %689 = vmatprep.subr.mxu0 0.0
    %690 = vmatpush1.msra.mxu0 0.0
    %691 = vmatprep.subr.mxu0 0.0
    %692 = vmatpush1.msra.mxu0 0.0
    %693 = vmatprep.subr.mxu0 0.0
    %694 = vmatpush1.msra.mxu0 0.0
    %695 = vmatprep.subr.mxu0 0.0
    %696 = vmatpush1.msra.mxu0 0.0
    %697 = vmatprep.subr.mxu0 0.0
    %698 = vmatpush1.msra.mxu0 0.0
    %699 = vmatprep.subr.mxu0 0.0
    %700 = vmatpush1.msra.mxu0 0.0
    %701 = vmatprep.subr.mxu0 0.0
    %702 = vmatpush1.msra.mxu0 0.0
    %703 = vmatprep.subr.mxu0 0.0
    %704 = vmatpush1.msra.mxu0 0.0
    %705 = vmatprep.subr.mxu0 0.0
    %706 = vmatpush1.msra.mxu0 0.0
    %707 = vmatprep.subr.mxu0 0.0
    %708 = vmatpush1.msra.mxu0 0.0
    %709 = vmatprep.subr.mxu0 0.0
    %710 = vmatpush1.msra.mxu0 0.0
    %711 = vmatprep.subr.mxu0 0.0
    %712 = vmatpush1.msra.mxu0 0.0
    %713 = vmatprep.subr.mxu0 0.0
    %714 = vmatpush1.msra.mxu0 0.0
    %715 = vmatprep.subr.mxu0 0.0
    %716 = vmatpush1.msra.mxu0 0.0
    %717 = vmatprep.subr.mxu0 0.0
    %718 = vmatpush1.msra.mxu0 0.0
    %719 = vmatprep.subr.mxu0 0.0
    %720 = vmatpush1.msra.mxu0 0.0
    %721 = vmatprep.subr.mxu0 0.0
    %722 = vmatpush1.msra.mxu0 0.0
    %723 = vmatprep.mubr.f32.mxu0 0.0
    %724 = vmatmul.mubr.f32.gmra.mrb[0].mxu0 %v657
    %v725 = vpop.f32.mrb[0].mxu0
    %v726 = vadd.f32 %v652, %v725
    %v727 = vpop.f32.mrb[0].mxu0
    %728 = vdwg.mxu0
    %vm729 = vcmask 123904
    %v730 = vsel %vm729, %v726, -inf
    %731 = vmax.xlane.f32.xlu0 %v730
    %v732 = vpop.xlane.xlu0 %731
    %v733 = vsub.f32 %v726, %v732
    %v734 = vmul.f32 %v733, 1.442695
    %v735 = vpow.pop %v734
    %v736 = vsel %vm729, %v735, 0.0
    %737 = vadd.xlane.f32.xlu0 %v736
    %v738 = vpop.xlane.xlu0 %737
    %v739 = vlog2.pop %v738
    %v740 = vmul.f32 %v739, 0.6931472
    %v741 = vadd.f32 %v740, %v732
    %v742 = vsub.f32 %v726, %v741
    %743 = vst.msk [vmem:[#allocation2] sm:$0x3] %vm729, %v742
    %vm745 = vcmask 254976
    %746 = vst.msk [vmem:[#allocation4] sm:$0x3] %vm745, %v656
    %747 = vst [vmem:[#allocation6] sm:$0x3] %v295
    // Predicated region
    $region50: #{decoder_forward.1} parent=1 // pred_check
      _
    $region51: #{decoder_forward.1} parent=1 // pred_check_branch
      %749 = sbr.rel (0) target = $region53
    $region52: #{decoder_forward.1} parent=1 // pred_region
      %s751 = ssub.s32 32, 32
      %752 = vsyncadd [#allocation3], %s751
      %s754 = sshll.u32 [#allocation2], 4
      %s755 = int_to_ptr.vmem [resolvable:$true] %s754
      %757 = dma.vmem_to_hbm [thread:$0]  %s755, 32, %s12, [#allocation3]
    $region53: #{decoder_forward.1} parent=1 // pred_fallthru
      _
    // Predicated region
    $region54: #{decoder_forward.1} parent=1 // pred_check
      _
    $region55: #{decoder_forward.1} parent=1 // pred_check_branch
      %759 = sbr.rel (0) target = $region57
    $region56: #{decoder_forward.1} parent=1 // pred_region
      %s761 = ssub.s32 32, 32
      %762 = vsyncadd [#allocation5], %s761
      %s764 = sshll.u32 [#allocation4], 4
      %s765 = int_to_ptr.vmem [resolvable:$true] %s764
      %767 = dma.vmem_to_hbm [thread:$0]  %s765, 32, %s13, [#allocation5]
    $region57: #{decoder_forward.1} parent=1 // pred_fallthru
      _
    // Predicated region
    $region58: #{decoder_forward.1} parent=1 // pred_check
      _
    $region59: #{decoder_forward.1} parent=1 // pred_check_branch
      %769 = sbr.rel (0) target = $region61
    $region60: #{decoder_forward.1} parent=1 // pred_region
      %s771 = ssub.s32 32, 32
      %772 = vsyncadd [#allocation5], %s771
      %s774 = sshll.u32 [#allocation6], 4
      %s775 = int_to_ptr.vmem [resolvable:$true] %s774
      %777 = dma.vmem_to_hbm [thread:$0]  %s775, 32, %s14, [#allocation5]
    $region61: #{decoder_forward.1} parent=1 // pred_fallthru
      _
    // Predicated region
    $region62: #{decoder_forward.1} parent=1 // pred_check
      _
    $region63: #{decoder_forward.1} parent=1 // pred_check_branch
      %779 = sbr.rel (0) target = $region65
    $region64: #{decoder_forward.1} parent=1 // pred_region
      %780 = dma.done [#allocation3], 32
    $region65: #{decoder_forward.1} parent=1 // pred_fallthru
      _
    // Predicated region
    $region66: #{decoder_forward.1} parent=1 // pred_check
      _
    $region67: #{decoder_forward.1} parent=1 // pred_check_branch
      %782 = sbr.rel (0) target = $region69
    $region68: #{decoder_forward.1} parent=1 // pred_region
      %783 = dma.done [#allocation5], 32
    $region69: #{decoder_forward.1} parent=1 // pred_fallthru
      _
    // Predicated region
    $region70: #{decoder_forward.1} parent=1 // pred_check
      _
    $region71: #{decoder_forward.1} parent=1 // pred_check_branch
      %785 = sbr.rel (0) target = $region73
    $region72: #{decoder_forward.1} parent=1 // pred_region
      %786 = dma.done [#allocation5], 32
    $region73: #{decoder_forward.1} parent=1 // pred_fallthru
      _
    %787 = vsyncpa [#allocation3], 1
    %788 = vsyncpa [#allocation5], 1

</llo_original>
